<compile_context>
chip_gen: v7x
topology: tpu7x:2x2x1
jax: 0.10.0
libtpu: 0.0.40
codegen_flags: <defaults>
</compile_context>

<pallas_src>
import math
import functools

import jax
import jax.numpy as jnp
from jax.experimental import pallas as pl
from jax.experimental.pallas import tpu as pltpu


def _round_up(x, m):
    return (x + m - 1) // m * m


# Conservative per-call VMEM budget: fits v7x's 32 MiB scoped default
# (64 MiB physical) as well as v5e/v6e.
_VMEM_BUDGET_BYTES = 24 * 1024 * 1024


# ----------------------------- kernels -------------------------------------


def _conv1x1_kernel(x_ref, w_ref, o_ref, *, use_relu):
    # x_ref: [TILE_N, Cin_p]   w_ref: [Cin_p, Cout_p] (pre-transposed, lane-dense)
    y = jnp.dot(x_ref[...], w_ref[...], preferred_element_type=jnp.float32)
    if use_relu:
        y = jnp.where(y >= 0, y, 0.25 * y)          # LeakyReLU(0.25)
    o_ref[...] = y.astype(o_ref.dtype)


def _conv1x1_bn_kernel(x_ref, w_ref, gamma_ref, beta_ref, o_ref, *,
                       n_actual, use_relu):
    # Single-block kernel: BatchNorm batch statistics need every row of the batch.
    y = jnp.dot(x_ref[...], w_ref[...], preferred_element_type=jnp.float32)
    # Exclude zero-padded rows (row >= n_actual) from the statistics.
    row_ids = jax.lax.broadcasted_iota(jnp.int32, y.shape, 0)
    valid = row_ids < n_actual
    inv_n = 1.0 / float(n_actual)
    mean = jnp.sum(jnp.where(valid, y, 0.0), axis=0, keepdims=True) * inv_n
    diff = jnp.where(valid, y - mean, 0.0)
    var = jnp.sum(diff * diff, axis=0, keepdims=True) * inv_n  # biased var (PyTorch)
    y = (y - mean) * jax.lax.rsqrt(var + 1e-5)
    y = y * gamma_ref[...] + beta_ref[...]
    if use_relu:
        y = jnp.where(y >= 0, y, 0.25 * y)
    o_ref[...] = y.astype(o_ref.dtype)


# ----------------------------- wrapper --------------------------------------


def conv_forward(x_nchw, weight, gamma=None, beta=None, *,
                 use_bn=False, use_relu=False):
    """x_nchw: [N, Cin, 1, 1]; weight: [Cout, Cin, 1, 1]. Returns [N, Cout]."""
    n, c_in, h, w_sp = x_nchw.shape
    assert h == 1 and w_sp == 1, "squeeze(3).squeeze(2) requires H == W == 1"
    c_out = weight.shape[0]
    dtype = x_nchw.dtype

    cin_p = _round_up(c_in, 128)
    cout_p = _round_up(c_out, 128)

    x2d = x_nchw.reshape(n, c_in)
    # Pre-transpose once in the wrapper (layout plumbing, not in-kernel XLU work).
    w_t = weight.reshape(c_out, c_in).T                       # [Cin, Cout]
    # Zero-pad channels to 128 lanes: padded Cin columns contribute 0 to the dot,
    # padded Cout columns are sliced off after the call.
    w_p = jnp.zeros((cin_p, cout_p), w_t.dtype).at[:c_in, :c_out].set(w_t)

    if use_bn:
        # BatchNorm needs full-batch statistics -> whole batch in one block.
        # TODO(synk): for batches too large for one VMEM block, a two-pass
        # (stats + normalize) scheme would be needed; not required here.
        n_p = _round_up(n, 8)
        x_p = jnp.zeros((n_p, cin_p), dtype).at[:n, :c_in].set(x2d)
        gamma_p = jnp.zeros((1, cout_p), jnp.float32).at[0, :c_out].set(
            gamma.reshape(-1).astype(jnp.float32))
        beta_p = jnp.zeros((1, cout_p), jnp.float32).at[0, :c_out].set(
            beta.reshape(-1).astype(jnp.float32))

        kernel = functools.partial(_conv1x1_bn_kernel, n_actual=n,
                                   use_relu=use_relu)
        out = pl.pallas_call(
            kernel,
            out_shape=jax.ShapeDtypeStruct((n_p, cout_p), dtype),
            grid_spec=pltpu.PrefetchScalarGridSpec(
                num_scalar_prefetch=0,
                grid=(1,),
                in_specs=[
                    pl.BlockSpec((n_p, cin_p), lambda i: (0, 0)),
                    pl.BlockSpec((cin_p, cout_p), lambda i: (0, 0)),
                    pl.BlockSpec((1, cout_p), lambda i: (0, 0)),
                    pl.BlockSpec((1, cout_p), lambda i: (0, 0)),
                ],
                out_specs=pl.BlockSpec((n_p, cout_p), lambda i: (0, 0)),
            ),
            compiler_params=pltpu.CompilerParams(
                dimension_semantics=("arbitrary",)),
        )(x_p, w_p, gamma_p, beta_p)
        return out[:n, :c_out]

    # ---- BN-off path: tile N with double-buffered BlockSpecs, weight resident ----
    tile_n = min(512, _round_up(n, 8))

    def _vmem_bytes(t):
        # 2x double-buffered x tile + 2x double-buffered out tile + 2x weight.
        return 4 * (2 * t * cin_p + 2 * t * cout_p + 2 * cin_p * cout_p)

    while tile_n > 8 and _vmem_bytes(tile_n) > _VMEM_BUDGET_BYTES:
        tile_n = max(8, _round_up(tile_n // 2, 8))
    # TODO(synk): for very large Cin (>2048) add a K-reduction grid axis with an
    # f32 VMEM accumulator instead of one skinny contraction block.

    n_p = _round_up(n, tile_n)
    x_p = jnp.zeros((n_p, cin_p), dtype).at[:n, :c_in].set(x2d)

    kernel = functools.partial(_conv1x1_kernel, use_relu=use_relu)
    out = pl.pallas_call(
        kernel,
        out_shape=jax.ShapeDtypeStruct((n_p, cout_p), dtype),
        grid_spec=pltpu.PrefetchScalarGridSpec(
            num_scalar_prefetch=0,
            grid=(n_p // tile_n,),
            in_specs=[
                pl.BlockSpec((tile_n, cin_p), lambda i: (i, 0)),
                pl.BlockSpec((cin_p, cout_p), lambda i: (0, 0)),  # resident weight
            ],
            out_specs=pl.BlockSpec((tile_n, cout_p), lambda i: (i, 0)),
        ),
        compiler_params=pltpu.CompilerParams(
            dimension_semantics=("parallel",)),   # shards N-tiles across v7x's 2 TCs
    )(x_p, w_p)
    return out[:n, :c_out]


def init_params(key, input_dim, output_dim):
    """Kaiming-normal init matching weights_init_kaiming:
    Conv2d weight ~ N(0, sqrt(2 / fan_out)), fan_out = output_dim * 1 * 1.
    BatchNorm2d: gamma = 1, beta = 0."""
    std = math.sqrt(2.0 / output_dim)
    weight = std * jax.random.normal(key, (output_dim, input_dim, 1, 1), jnp.float32)
    gamma = jnp.ones((output_dim,), jnp.float32)
    beta = jnp.zeros((output_dim,), jnp.float32)
    return weight, gamma, beta


if __name__ == "__main__":
    # Small shapes consistent with the module: x is [N, Cin, 1, 1] (pooled feature).
    # Cin/Cout deliberately not multiples of 128 to exercise the padding path.
    N, C_IN, C_OUT = 16, 48, 96

    key = jax.random.PRNGKey(0)
    k_x, k_w = jax.random.split(key)
    x = jax.random.normal(k_x, (N, C_IN, 1, 1), jnp.float32)
    weight, gamma, beta = init_params(k_w, C_IN, C_OUT)

    # Default module configuration: relu=False, BN=False.
    out = conv_forward(x, weight, use_bn=False, use_relu=False)
    out = jax.block_until_ready(out)
    ref = x.reshape(N, C_IN) @ weight.reshape(C_OUT, C_IN).T
    assert out.shape == (N, C_OUT)
    assert jnp.allclose(out, ref, atol=1e-4, rtol=1e-4)

    # BN + LeakyReLU configuration (training-mode batch statistics).
    out_bn = conv_forward(x, weight, gamma, beta, use_bn=True, use_relu=True)
    out_bn = jax.block_until_ready(out_bn)
    mean = jnp.mean(ref, axis=0, keepdims=True)
    var = jnp.mean((ref - mean) ** 2, axis=0, keepdims=True)
    y_bn = (ref - mean) * jax.lax.rsqrt(var + 1e-5) * gamma[None, :] + beta[None, :]
    ref_bn = jnp.where(y_bn >= 0, y_bn, 0.25 * y_bn)
    assert out_bn.shape == (N, C_OUT)
    assert jnp.allclose(out_bn, ref_bn, atol=1e-4, rtol=1e-4)

    print("KERNEL_OK")
</pallas_src>

<mosaic_0001>
module attributes {stable_mosaic.version = 11 : i64} {
  func.func @_conv1x1_kernel(%arg0: i32, %arg1: memref<16x128xf32, #tpu.memory_space<vmem>>, %arg2: memref<128x128xf32, #tpu.memory_space<vmem>>, %arg3: memref<16x128xf32, #tpu.memory_space<vmem>>) attributes {dimension_semantics = [#tpu.dimension_semantics<parallel>], iteration_bounds = array<i64: 1>, scalar_prefetch = 0 : i64, scratch_operands = 0 : i64, tpu.core_type = #tpu.core_type<tc>, window_params = [{transform_indices = @transform_0, window_bounds = array<i64: 16, 128>}, {pipeline_mode = #tpu.pipeline_mode<synchronous>, transform_indices = @transform_1, window_bounds = array<i64: 128, 128>}, {transform_indices = @transform_2, window_bounds = array<i64: 16, 128>}]} {
    %c0 = arith.constant 0 : index
    %c0_0 = arith.constant 0 : index
    %0 = vector.load %arg1[%c0, %c0_0] : memref<16x128xf32, #tpu.memory_space<vmem>>, vector<16x128xf32>
    %c0_1 = arith.constant 0 : index
    %c0_2 = arith.constant 0 : index
    %1 = vector.load %arg2[%c0_1, %c0_2] : memref<128x128xf32, #tpu.memory_space<vmem>>, vector<128x128xf32>
    %cst = arith.constant dense<0.000000e+00> : vector<16x128xf32>
    %2 = tpu.matmul %0, %1, %cst {dimension_numbers = #tpu.dot_dimension_numbers<[1], [0], [0], [1], [0, 0, 1, 1], [], []>} : vector<16x128xf32>, vector<128x128xf32>, vector<16x128xf32> -> vector<16x128xf32>
    %c0_3 = arith.constant 0 : index
    %c0_4 = arith.constant 0 : index
    %3 = vector.load %arg3[%c0_3, %c0_4] : memref<16x128xf32, #tpu.memory_space<vmem>>, vector<16x128xf32>
    tpu.vector_store %arg3[%c0_3, %c0_4], %2 {strides = array<i32>} : memref<16x128xf32, #tpu.memory_space<vmem>>, vector<16x128xf32>,
    return
  }
  func.func @transform_0(%arg0: i32) -> (i32, i32) {
    %c0_i32 = arith.constant 0 : i32
    %c0_i32_0 = arith.constant 0 : i32
    return %arg0, %c0_i32 : i32, i32
  }
  func.func @transform_1(%arg0: i32) -> (i32, i32) {
    %c0_i32 = arith.constant 0 : i32
    %c0_i32_0 = arith.constant 0 : i32
    %c0_i32_1 = arith.constant 0 : i32
    return %c0_i32, %c0_i32_0 : i32, i32
  }
  func.func @transform_2(%arg0: i32) -> (i32, i32) {
    %c0_i32 = arith.constant 0 : i32
    %c0_i32_0 = arith.constant 0 : i32
    return %arg0, %c0_i32 : i32, i32
  }
}

</mosaic_0001>

<llo_original>
// kernel: tpu_custom_call.1
$region0: #{tpu_custom_call.1}
  #allocation0 [shape = 'u32[]', space=smem, size = 0x4, offset = 0x4, fixed_abs, tag = 'smem constant byte address 0x4 - core index']
  #allocation1 [shape = 'u32[144,128]{1,0:T(1,128)}', space=vmem, size = 0x12000, scoped, tag = 'internal scratch']
  %s0 = inlined_call_operand.hbm [shape: f32[16,128], index: 0, kind: input, shape index: {}]
  %s1 = inlined_call_operand.hbm [shape: f32[128,128], index: 1, kind: input, shape index: {}]
  %s2 = inlined_call_operand.hbm [shape: f32[16,128], index: 2, kind: output, shape index: {}]
  %s3 = sld [smem:[#allocation0]]
  $region26: #{tpu_custom_call.1} parent=0
    _
  %s5 = ssub.s32 1, %s3
  %s6 = scalar_select 0, %s5, %s3
  $region1: #{tpu_custom_call.1} parent=0
    #allocation2 [shape = 'u8[8192]{0}', space=vmem, size = 0x2000, scoped, tag = 'input window, operand 0, single buffered']
    #allocation3 [shape = 's32[1]{0}', space=sflag, size = 0x4, scoped, tag = 'scoped memory for tpu_custom_call.1']
    #allocation4 [shape = 's32[1]{0}', space=sflag, size = 0x4, scoped, tag = 'scoped memory for tpu_custom_call.1']
    #allocation5 [shape = 'u8[65536]{0}', space=vmem, size = 0x10000, scoped, tag = 'input window, operand 1, single buffered']
    #allocation6 [shape = 's32[1]{0}', space=sflag, size = 0x4, scoped, tag = 'scoped memory for tpu_custom_call.1']
    #allocation7 [shape = 'u8[8192]{0}', space=vmem, size = 0x2000, scoped, tag = 'output window, operand 0, single buffered']
    %7 = vsyncpa [#allocation3], 0
    %8 = vsyncpa [#allocation6], 0
    %9 = vsyncpa [#allocation4], 0
    // Predicated region
    $region2: #{tpu_custom_call.1} parent=1 // pred_check
      _
    $region3: #{tpu_custom_call.1} parent=1 // pred_check_branch
      %11 = sbr.rel (0) target = $region5
    $region4: #{tpu_custom_call.1} parent=1 // pred_region
      %s13 = ssub.s32 256, 256
      %14 = vsyncadd [#allocation3], %s13
      %s15 = sshll.u32 [#allocation2], 4
      %s16 = int_to_ptr.vmem [resolvable:$true] %s15
      %21 = dma.hbm_to_vmem [thread:$0]  %s0, 256, %s16, [#allocation3], 128, 128, 8
    $region5: #{tpu_custom_call.1} parent=1 // pred_fallthru
      _
    // Predicated region
    $region6: #{tpu_custom_call.1} parent=1 // pred_check
      _
    $region7: #{tpu_custom_call.1} parent=1 // pred_check_branch
      %23 = sbr.rel (0) target = $region9
    $region8: #{tpu_custom_call.1} parent=1 // pred_region
      %s25 = ssub.s32 2048, 2048
      %26 = vsyncadd [#allocation6], %s25
      %s27 = sshll.u32 [#allocation5], 4
      %s28 = int_to_ptr.vmem [resolvable:$true] %s27
      %33 = dma.hbm_to_vmem [thread:$0]  %s1, 2048, %s28, [#allocation6], 128, 128, 8
    $region9: #{tpu_custom_call.1} parent=1 // pred_fallthru
      _
    // Predicated region
    $region10: #{tpu_custom_call.1} parent=1 // pred_check
      _
    $region11: #{tpu_custom_call.1} parent=1 // pred_check_branch
      %35 = sbr.rel (0) target = $region13
    $region12: #{tpu_custom_call.1} parent=1 // pred_region
      %36 = dma.done [#allocation3], 256
    $region13: #{tpu_custom_call.1} parent=1 // pred_fallthru
      _
    // Predicated region
    $region14: #{tpu_custom_call.1} parent=1 // pred_check
      _
    $region15: #{tpu_custom_call.1} parent=1 // pred_check_branch
      %38 = sbr.rel (0) target = $region17
    $region16: #{tpu_custom_call.1} parent=1 // pred_region
      %39 = dma.done [#allocation6], 2048
    $region17: #{tpu_custom_call.1} parent=1 // pred_fallthru
      _
    %v40 = vld [vmem:[#allocation2] sm:$0xff]
    %v41 = vld [vmem:[#allocation2 + $0x8] sm:$0xff]
    %v42 = vld [vmem:[#allocation5] sm:$0xff]
    %v43 = vld [vmem:[#allocation5 + $0x8] sm:$0xff]
    %v44 = vld [vmem:[#allocation5 + $0x10] sm:$0xff]
    %v45 = vld [vmem:[#allocation5 + $0x18] sm:$0xff]
    %v46 = vld [vmem:[#allocation5 + $0x20] sm:$0xff]
    %v47 = vld [vmem:[#allocation5 + $0x28] sm:$0xff]
    %v48 = vld [vmem:[#allocation5 + $0x30] sm:$0xff]
    %v49 = vld [vmem:[#allocation5 + $0x38] sm:$0xff]
    %v50 = vld [vmem:[#allocation5 + $0x40] sm:$0xff]
    %v51 = vld [vmem:[#allocation5 + $0x48] sm:$0xff]
    %v52 = vld [vmem:[#allocation5 + $0x50] sm:$0xff]
    %v53 = vld [vmem:[#allocation5 + $0x58] sm:$0xff]
    %v54 = vld [vmem:[#allocation5 + $0x60] sm:$0xff]
    %v55 = vld [vmem:[#allocation5 + $0x68] sm:$0xff]
    %v56 = vld [vmem:[#allocation5 + $0x70] sm:$0xff]
    %v57 = vld [vmem:[#allocation5 + $0x78] sm:$0xff]
    %58 = vmatprep.subr.mxu0 0.0
    %59 = vmatpush1.msra.mxu0 %v42
    %60 = vmatprep.subr.mxu0 0.0
    %61 = vmatpush1.msra.mxu0 %v43
    %62 = vmatprep.subr.mxu0 0.0
    %63 = vmatpush1.msra.mxu0 %v44
    %64 = vmatprep.subr.mxu0 0.0
    %65 = vmatpush1.msra.mxu0 %v45
    %66 = vmatprep.subr.mxu0 0.0
    %67 = vmatpush1.msra.mxu0 %v46
    %68 = vmatprep.subr.mxu0 0.0
    %69 = vmatpush1.msra.mxu0 %v47
    %70 = vmatprep.subr.mxu0 0.0
    %71 = vmatpush1.msra.mxu0 %v48
    %72 = vmatprep.subr.mxu0 0.0
    %73 = vmatpush1.msra.mxu0 %v49
    %74 = vmatprep.subr.mxu0 0.0
    %75 = vmatpush1.msra.mxu0 %v50
    %76 = vmatprep.subr.mxu0 0.0
    %77 = vmatpush1.msra.mxu0 %v51
    %78 = vmatprep.subr.mxu0 0.0
    %79 = vmatpush1.msra.mxu0 %v52
    %80 = vmatprep.subr.mxu0 0.0
    %81 = vmatpush1.msra.mxu0 %v53
    %82 = vmatprep.subr.mxu0 0.0
    %83 = vmatpush1.msra.mxu0 %v54
    %84 = vmatprep.subr.mxu0 0.0
    %85 = vmatpush1.msra.mxu0 %v55
    %86 = vmatprep.subr.mxu0 0.0
    %87 = vmatpush1.msra.mxu0 %v56
    %88 = vmatprep.subr.mxu0 0.0
    %89 = vmatpush1.msra.mxu0 %v57
    %90 = vmatprep.subr.mxu0 0.0
    %91 = vmatpush1.msra.mxu0 0.0
    %92 = vmatprep.subr.mxu0 0.0
    %93 = vmatpush1.msra.mxu0 0.0
    %94 = vmatprep.subr.mxu0 0.0
    %95 = vmatpush1.msra.mxu0 0.0
    %96 = vmatprep.subr.mxu0 0.0
    %97 = vmatpush1.msra.mxu0 0.0
    %98 = vmatprep.subr.mxu0 0.0
    %99 = vmatpush1.msra.mxu0 0.0
    %100 = vmatprep.subr.mxu0 0.0
    %101 = vmatpush1.msra.mxu0 0.0
    %102 = vmatprep.subr.mxu0 0.0
    %103 = vmatpush1.msra.mxu0 0.0
    %104 = vmatprep.subr.mxu0 0.0
    %105 = vmatpush1.msra.mxu0 0.0
    %106 = vmatprep.subr.mxu0 0.0
    %107 = vmatpush1.msra.mxu0 0.0
    %108 = vmatprep.subr.mxu0 0.0
    %109 = vmatpush1.msra.mxu0 0.0
    %110 = vmatprep.subr.mxu0 0.0
    %111 = vmatpush1.msra.mxu0 0.0
    %112 = vmatprep.subr.mxu0 0.0
    %113 = vmatpush1.msra.mxu0 0.0
    %114 = vmatprep.subr.mxu0 0.0
    %115 = vmatpush1.msra.mxu0 0.0
    %116 = vmatprep.subr.mxu0 0.0
    %117 = vmatpush1.msra.mxu0 0.0
    %118 = vmatprep.subr.mxu0 0.0
    %119 = vmatpush1.msra.mxu0 0.0
    %120 = vmatprep.subr.mxu0 0.0
    %121 = vmatpush1.msra.mxu0 0.0
    %122 = vmatprep.mubr.f32.mxu0 0.0
    %123 = vmatmul.mubr.f32.gmra.mrb[0].mxu0 %v40
    %v124 = vpop.f32.mrb[0].mxu0
    %v125 = vadd.f32 0.0, %v124
    %v126 = vpop.f32.mrb[0].mxu0
    %127 = vmatprep.mubr.f32.mxu0 0.0
    %128 = vmatmul.mubr.f32.gmra.mrb[0].mxu0 %v41
    %v129 = vpop.f32.mrb[0].mxu0
    %v130 = vadd.f32 0.0, %v129
    %v131 = vpop.f32.mrb[0].mxu0
    %132 = vdwg.mxu0
    %133 = vst [vmem:[#allocation7] sm:$0xff] %v125
    %134 = vst [vmem:[#allocation7 + $0x8] sm:$0xff] %v130
    // Predicated region
    $region18: #{tpu_custom_call.1} parent=1 // pred_check
      _
    $region19: #{tpu_custom_call.1} parent=1 // pred_check_branch
      %136 = sbr.rel (0) target = $region21
    $region20: #{tpu_custom_call.1} parent=1 // pred_region
      %s138 = ssub.s32 256, 256
      %139 = vsyncadd [#allocation4], %s138
      %s140 = sshll.u32 [#allocation7], 4
      %s141 = int_to_ptr.vmem [resolvable:$true] %s140
      %146 = dma.vmem_to_hbm [thread:$0]  %s141, 256, %s2, [#allocation4], 128, 128, 8
    $region21: #{tpu_custom_call.1} parent=1 // pred_fallthru
      _
    // Predicated region
    $region22: #{tpu_custom_call.1} parent=1 // pred_check
      _
    $region23: #{tpu_custom_call.1} parent=1 // pred_check_branch
      %148 = sbr.rel (0) target = $region25
    $region24: #{tpu_custom_call.1} parent=1 // pred_region
      %149 = dma.done [#allocation4], 256
    $region25: #{tpu_custom_call.1} parent=1 // pred_fallthru
      _
    %150 = vsyncpa [#allocation3], 1
    %151 = vsyncpa [#allocation6], 1
    %152 = vsyncpa [#allocation4], 1

</llo_original>
